<compile_context>
chip_gen: v6e
topology: v6e:2x2x1
jax: 0.10.0
libtpu: 0.0.40
codegen_flags: <defaults>
</compile_context>

<pallas_src>
import functools
import math

import jax
import jax.numpy as jnp
from jax.experimental import pallas as pl
from jax.experimental.pallas import tpu as pltpu


def _bilinear_attn_kernel(q_ref, k_ref, v_ref, mask_ref, w_ref, out_ref, att_ref,
                          *, scale, approx_reciprocal):
    # q_ref:   (BB, TQ, Dq)   k_ref: (BB, Lk, Dk)   v_ref: (BB, Lk, Dv)
    # mask_ref:(BB, 1,  Lk)   w_ref: (Dq, Dk)
    bb, tq, dq = q_ref.shape
    dk = k_ref.shape[2]

    # ---- q @ W as a single flattened (BB*TQ, Dq) x (Dq, Dk) MXU matmul ------
    q2 = q_ref[...].reshape(bb * tq, dq)
    qw = jnp.dot(q2, w_ref[...], preferred_element_type=jnp.float32)  # (BB*TQ, Dk)
    if scale != 1.0:
        # Fold 1/sqrt(Dk) into qw: scaling (TQ, Dk) is cheaper than (TQ, Lk).
        qw = qw * jnp.float32(scale)
    qw = qw.reshape(bb, tq, dk)

    # ---- scores = qw @ k^T, expressed as a contraction on k's last dim ------
    # (no explicit k.T -> no per-step XLU transpose / VMEM copy)
    scores = jnp.einsum("bqd,bkd->bqk", qw, k_ref[...],
                        preferred_element_type=jnp.float32)           # (BB, TQ, Lk)

    # masked_fill(mask == 0, -1e9); mask broadcasts over the query axis.
    scores = jnp.where(mask_ref[...] == 0, jnp.float32(-1e9), scores)

    # Numerically stable softmax over the key axis.
    m = jnp.max(scores, axis=-1, keepdims=True)
    e = jnp.exp(scores - m)
    s = jnp.sum(e, axis=-1, keepdims=True)
    att = e * pl.reciprocal(s, approx=approx_reciprocal)              # (BB, TQ, Lk)

    # ---- out = att @ v -------------------------------------------------------
    v = v_ref[...]
    att_mm = att if v.dtype == jnp.float32 else att.astype(v.dtype)
    out = jnp.einsum("bqk,bkd->bqd", att_mm, v,
                     preferred_element_type=jnp.float32)              # (BB, TQ, Dv)

    out_ref[...] = out.astype(out_ref.dtype)
    att_ref[...] = att.astype(att_ref.dtype)


def _choose_tiles(B, Lq, Lk, Dq, Dk, Dv, itemsize, budget=36 * 1024 * 1024):
    """Pick (BB, TQ) so per-step VMEM (incl. double-buffering + temps) fits budget."""

    def vmem_cost(bb, tq):
        io_in = bb * (tq * Dq + Lk * (Dk + Dv) + Lk) * itemsize        # q, k, v, mask
        io_out = bb * tq * (Dv * itemsize + Lk * 4)                    # out + att(f32)
        w = Dq * Dk * itemsize
        temps = bb * tq * (2 * Lk + Dk + Dv) * 4                       # scores/exp/qw/out (f32)
        return 2 * (io_in + io_out) + w + temps                        # 2x: double-buffered

    # TQ: largest divisor of Lq that is Lq itself or a multiple of 8 and fits (bb=1).
    tq_candidates = [Lq] + [t for t in range(8 * (Lq // 8), 0, -8) if Lq % t == 0]
    tq = tq_candidates[-1]
    for t in tq_candidates:
        if vmem_cost(1, t) <= budget:
            tq = t
            break

    # BB: largest divisor of B that still fits with the chosen TQ.
    bb = 1
    for cand in range(B, 0, -1):
        if B % cand == 0 and vmem_cost(cand, tq) <= budget:
            bb = cand
            break
    return bb, tq


def bilinear_attention(q, k, v, k_length_index, w, *, scaled_att=True,
                       att_dtype=jnp.float32, approx_reciprocal=True):
    """Pallas implementation of BilinearAttention.forward (dropout=0).

    att_dtype can be set to jnp.bfloat16 to halve att writeback traffic
    (useful on bandwidth-limited v5e); default keeps f32 parity with torch.
    """
    B, Lq, Dq = q.shape
    _, Lk, Dk = k.shape
    Dv = v.shape[-1]
    assert w.shape == (Dq, Dk)
    assert k.shape[0] == B and v.shape[0] == B and v.shape[1] == Lk

    mask = k_length_index.reshape(B, 1, Lk).astype(jnp.int32)
    scale = float(Dk) ** -0.5 if scaled_att else 1.0

    itemsize = jnp.dtype(q.dtype).itemsize
    BB, TQ = _choose_tiles(B, Lq, Lk, Dq, Dk, Dv, itemsize)

    kernel = functools.partial(_bilinear_attn_kernel, scale=scale,
                               approx_reciprocal=approx_reciprocal)

    grid_spec = pltpu.PrefetchScalarGridSpec(
        num_scalar_prefetch=0,
        grid=(B // BB, Lq // TQ),                      # batch outermost; k/v re-used across Lq tiles
        in_specs=[
            pl.BlockSpec((BB, TQ, Dq), lambda b, i: (b, i, 0)),
            pl.BlockSpec((BB, Lk, Dk), lambda b, i: (b, 0, 0)),
            pl.BlockSpec((BB, Lk, Dv), lambda b, i: (b, 0, 0)),
            pl.BlockSpec((BB, 1, Lk), lambda b, i: (b, 0, 0)),
            pl.BlockSpec((Dq, Dk), lambda b, i: (0, 0)),   # W: constant index -> fetched once
        ],
        out_specs=[
            pl.BlockSpec((BB, TQ, Dv), lambda b, i: (b, i, 0)),
            pl.BlockSpec((BB, TQ, Lk), lambda b, i: (b, i, 0)),
        ],
    )

    out, att = pl.pallas_call(
        kernel,
        out_shape=(
            jax.ShapeDtypeStruct((B, Lq, Dv), q.dtype),
            jax.ShapeDtypeStruct((B, Lq, Lk), att_dtype),
        ),
        grid_spec=grid_spec,
        compiler_params=pltpu.CompilerParams(
            dimension_semantics=("parallel", "parallel"),
            vmem_limit_bytes=48 * 1024 * 1024,
        ),
    )(q, k, v, mask, w)
    return out, att


def _reference(q, k, v, k_length_index, w):
    scores = jnp.einsum("bqd,de,bke->bqk", q, w, k)
    scores = scores * (k.shape[-1] ** -0.5)
    mask = k_length_index[:, None, :]
    scores = jnp.where(mask == 0, -1e9, scores)
    att = jax.nn.softmax(scores, axis=-1)
    return jnp.einsum("bqk,bkd->bqd", att, v), att


if __name__ == "__main__":
    B, Lq, Lk = 2, 8, 8
    q_dim, k_dim, v_dim = 32, 32, 32

    key = jax.random.PRNGKey(0)
    kq, kk, kv, kw = jax.random.split(key, 4)

    q = jax.random.normal(kq, (B, Lq, q_dim), dtype=jnp.float32)
    k = jax.random.normal(kk, (B, Lk, k_dim), dtype=jnp.float32)
    v = jax.random.normal(kv, (B, Lk, v_dim), dtype=jnp.float32)

    # xavier_uniform_(W, gain=1.0): U(-a, a) with a = sqrt(6 / (q_dim + k_dim))
    a = math.sqrt(6.0 / (q_dim + k_dim))
    w = jax.random.uniform(kw, (q_dim, k_dim), minval=-a, maxval=a,
                           dtype=jnp.float32)

    # k_length_index: 1 = valid key position, 0 = padding
    lengths = jnp.array([Lk, 5], dtype=jnp.int32)
    k_length_index = (jnp.arange(Lk)[None, :] < lengths[:, None]).astype(jnp.int32)

    ref_out, ref_att = _reference(q, k, v, k_length_index, w)

    # Fast path: EUP approximate reciprocal in the softmax normalization.
    out, att = bilinear_attention(q, k, v, k_length_index, w,
                                  approx_reciprocal=True)
    out = jax.block_until_ready(out)
    att = jax.block_until_ready(att)
    assert jnp.allclose(out, ref_out, atol=2e-3, rtol=2e-3)
    assert jnp.allclose(att, ref_att, atol=2e-3, rtol=2e-3)

    # Exact path: bit-level-parity softmax normalization.
    out_x, att_x = bilinear_attention(q, k, v, k_length_index, w,
                                      approx_reciprocal=False)
    out_x = jax.block_until_ready(out_x)
    att_x = jax.block_until_ready(att_x)
    assert jnp.allclose(out_x, ref_out, atol=1e-5, rtol=1e-5)
    assert jnp.allclose(att_x, ref_att, atol=1e-5, rtol=1e-5)

    print("KERNEL_OK")
</pallas_src>

<mosaic_0001>
module attributes {stable_mosaic.version = 11 : i64} {
  func.func @_bilinear_attn_kernel(%arg0: i32, %arg1: i32, %arg2: memref<2x8x32xf32, #tpu.memory_space<vmem>>, %arg3: memref<2x8x32xf32, #tpu.memory_space<vmem>>, %arg4: memref<2x8x32xf32, #tpu.memory_space<vmem>>, %arg5: memref<2x1x8xi32, #tpu.memory_space<vmem>>, %arg6: memref<32x32xf32, #tpu.memory_space<vmem>>, %arg7: memref<2x8x32xf32, #tpu.memory_space<vmem>>, %arg8: memref<2x8x8xf32, #tpu.memory_space<vmem>>) attributes {dimension_semantics = [#tpu.dimension_semantics<parallel>, #tpu.dimension_semantics<parallel>], iteration_bounds = array<i64: 1, 1>, scalar_prefetch = 0 : i64, scratch_operands = 0 : i64, tpu.core_type = #tpu.core_type<tc>, window_params = [{transform_indices = @transform_0, window_bounds = array<i64: 2, 8, 32>}, {transform_indices = @transform_1, window_bounds = array<i64: 2, 8, 32>}, {transform_indices = @transform_2, window_bounds = array<i64: 2, 8, 32>}, {transform_indices = @transform_3, window_bounds = array<i64: 2, 1, 8>}, {pipeline_mode = #tpu.pipeline_mode<synchronous>, transform_indices = @transform_4, window_bounds = array<i64: 32, 32>}, {transform_indices = @transform_5, window_bounds = array<i64: 2, 8, 32>}, {transform_indices = @transform_6, window_bounds = array<i64: 2, 8, 8>}]} {
    %c0 = arith.constant 0 : index
    %c0_0 = arith.constant 0 : index
    %c0_1 = arith.constant 0 : index
    %0 = vector.load %arg2[%c0, %c0_0, %c0_1] : memref<2x8x32xf32, #tpu.memory_space<vmem>>, vector<2x8x32xf32>
    %1 = vector.shape_cast %0 : vector<2x8x32xf32> to vector<16x32xf32>
    %c0_2 = arith.constant 0 : index
    %c0_3 = arith.constant 0 : index
    %2 = vector.load %arg6[%c0_2, %c0_3] : memref<32x32xf32, #tpu.memory_space<vmem>>, vector<32x32xf32>
    %cst = arith.constant dense<0.000000e+00> : vector<16x32xf32>
    %3 = tpu.matmul %1, %2, %cst {dimension_numbers = #tpu.dot_dimension_numbers<[1], [0], [0], [1], [0, 0, 1, 1], [], []>} : vector<16x32xf32>, vector<32x32xf32>, vector<16x32xf32> -> vector<16x32xf32>
    %cst_4 = arith.constant 0.176776692 : f32
    %4 = vector.broadcast %cst_4 : f32 to vector<16x32xf32>
    %5 = arith.mulf %3, %4 : vector<16x32xf32>
    %6 = vector.shape_cast %5 : vector<16x32xf32> to vector<2x8x32xf32>
    %c0_5 = arith.constant 0 : index
    %c0_6 = arith.constant 0 : index
    %c0_7 = arith.constant 0 : index
    %7 = vector.load %arg3[%c0_5, %c0_6, %c0_7] : memref<2x8x32xf32, #tpu.memory_space<vmem>>, vector<2x8x32xf32>
    "tpu.trace_start"() <{level = 10 : i32, message = "bqd,bkd->bqk"}> : () -> ()
    %cst_8 = arith.constant dense<0.000000e+00> : vector<2x8x8xf32>
    %8 = tpu.matmul %6, %7, %cst_8 {dimension_numbers = #tpu.dot_dimension_numbers<[2], [2], [1], [1], [0, 0, 0, 1, 1, 1], [0], [0]>} : vector<2x8x32xf32>, vector<2x8x32xf32>, vector<2x8x8xf32> -> vector<2x8x8xf32>
    "tpu.trace_stop"() : () -> ()
    %c0_9 = arith.constant 0 : index
    %c0_10 = arith.constant 0 : index
    %c0_11 = arith.constant 0 : index
    %9 = vector.load %arg5[%c0_9, %c0_10, %c0_11] : memref<2x1x8xi32, #tpu.memory_space<vmem>>, vector<2x1x8xi32>
    %c0_i32 = arith.constant 0 : i32
    %10 = vector.broadcast %c0_i32 : i32 to vector<2x1x8xi32>
    %11 = arith.cmpi eq, %9, %10 : vector<2x1x8xi32>
    %cst_12 = arith.constant -1.000000e+09 : f32
    %12 = vector.shape_cast %11 : vector<2x1x8xi1> to vector<2x1x8xi1>
    %13 = vector.broadcast %12 : vector<2x1x8xi1> to vector<2x8x8xi1>
    %14 = vector.broadcast %cst_12 : f32 to vector<2x8x8xf32>
    %15 = arith.select %13, %14, %8 : vector<2x8x8xi1>, vector<2x8x8xf32>
    %cst_13 = arith.constant dense<0xFF800000> : vector<2x8xf32>
    %16 = vector.multi_reduction <maximumf>, %15, %cst_13 [2] : vector<2x8x8xf32> to vector<2x8xf32>
    %17 = vector.shape_cast %16 : vector<2x8xf32> to vector<2x8x1xf32>
    %18 = vector.broadcast %17 : vector<2x8x1xf32> to vector<2x8x8xf32>
    %19 = arith.subf %15, %18 : vector<2x8x8xf32>
    %20 = math.exp %19 : vector<2x8x8xf32>
    %cst_14 = arith.constant dense<0.000000e+00> : vector<2x8xf32>
    %21 = vector.multi_reduction <add>, %20, %cst_14 [2] : vector<2x8x8xf32> to vector<2x8xf32>
    %22 = vector.shape_cast %21 : vector<2x8xf32> to vector<2x8x1xf32>
    %23 = tpu.reciprocal %22 {approx = true} : vector<2x8x1xf32> -> vector<2x8x1xf32>
    %24 = vector.broadcast %23 : vector<2x8x1xf32> to vector<2x8x8xf32>
    %25 = arith.mulf %20, %24 : vector<2x8x8xf32>
    %c0_15 = arith.constant 0 : index
    %c0_16 = arith.constant 0 : index
    %c0_17 = arith.constant 0 : index
    %26 = vector.load %arg4[%c0_15, %c0_16, %c0_17] : memref<2x8x32xf32, #tpu.memory_space<vmem>>, vector<2x8x32xf32>
    "tpu.trace_start"() <{level = 10 : i32, message = "bqk,bkd->bqd"}> : () -> ()
    %cst_18 = arith.constant dense<0.000000e+00> : vector<2x8x32xf32>
    %27 = tpu.matmul %25, %26, %cst_18 {dimension_numbers = #tpu.dot_dimension_numbers<[2], [1], [1], [2], [0, 0, 0, 1, 1, 2], [0], [0]>} : vector<2x8x8xf32>, vector<2x8x32xf32>, vector<2x8x32xf32> -> vector<2x8x32xf32>
    "tpu.trace_stop"() : () -> ()
    %c0_19 = arith.constant 0 : index
    %c0_20 = arith.constant 0 : index
    %c0_21 = arith.constant 0 : index
    %28 = vector.load %arg7[%c0_19, %c0_20, %c0_21] : memref<2x8x32xf32, #tpu.memory_space<vmem>>, vector<2x8x32xf32>
    tpu.vector_store %arg7[%c0_19, %c0_20, %c0_21], %27 {strides = array<i32>} : memref<2x8x32xf32, #tpu.memory_space<vmem>>, vector<2x8x32xf32>,
    %c0_22 = arith.constant 0 : index
    %c0_23 = arith.constant 0 : index
    %c0_24 = arith.constant 0 : index
    %29 = vector.load %arg8[%c0_22, %c0_23, %c0_24] : memref<2x8x8xf32, #tpu.memory_space<vmem>>, vector<2x8x8xf32>
    tpu.vector_store %arg8[%c0_22, %c0_23, %c0_24], %25 {strides = array<i32>} : memref<2x8x8xf32, #tpu.memory_space<vmem>>, vector<2x8x8xf32>,
    return
  }
  func.func @transform_0(%arg0: i32, %arg1: i32) -> (i32, i32, i32) {
    %c0_i32 = arith.constant 0 : i32
    %c0_i32_0 = arith.constant 0 : i32
    return %arg0, %arg1, %c0_i32 : i32, i32, i32
  }
  func.func @transform_1(%arg0: i32, %arg1: i32) -> (i32, i32, i32) {
    %c0_i32 = arith.constant 0 : i32
    %c0_i32_0 = arith.constant 0 : i32
    %c0_i32_1 = arith.constant 0 : i32
    return %arg0, %c0_i32, %c0_i32_0 : i32, i32, i32
  }
  func.func @transform_2(%arg0: i32, %arg1: i32) -> (i32, i32, i32) {
    %c0_i32 = arith.constant 0 : i32
    %c0_i32_0 = arith.constant 0 : i32
    %c0_i32_1 = arith.constant 0 : i32
    return %arg0, %c0_i32, %c0_i32_0 : i32, i32, i32
  }
  func.func @transform_3(%arg0: i32, %arg1: i32) -> (i32, i32, i32) {
    %c0_i32 = arith.constant 0 : i32
    %c0_i32_0 = arith.constant 0 : i32
    %c0_i32_1 = arith.constant 0 : i32
    return %arg0, %c0_i32, %c0_i32_0 : i32, i32, i32
  }
  func.func @transform_4(%arg0: i32, %arg1: i32) -> (i32, i32) {
    %c0_i32 = arith.constant 0 : i32
    %c0_i32_0 = arith.constant 0 : i32
    %c0_i32_1 = arith.constant 0 : i32
    return %c0_i32, %c0_i32_0 : i32, i32
  }
  func.func @transform_5(%arg0: i32, %arg1: i32) -> (i32, i32, i32) {
    %c0_i32 = arith.constant 0 : i32
    %c0_i32_0 = arith.constant 0 : i32
    return %arg0, %arg1, %c0_i32 : i32, i32, i32
  }
  func.func @transform_6(%arg0: i32, %arg1: i32) -> (i32, i32, i32) {
    %c0_i32 = arith.constant 0 : i32
    %c0_i32_0 = arith.constant 0 : i32
    return %arg0, %arg1, %c0_i32 : i32, i32, i32
  }
}

</mosaic_0001>

<llo_original>
// kernel: tpu_custom_call.1
$region0: #{tpu_custom_call.1}
  #allocation0 [shape = 'u32[]', space=smem, size = 0x4, offset = 0x4, fixed_abs, tag = 'smem constant byte address 0x4 - core index']
  #allocation1 [shape = 'u32[144,128]{1,0:T(1,128)}', space=vmem, size = 0x12000, scoped, tag = 'internal scratch']
  %s0 = inlined_call_operand.hbm [shape: f32[2,8,32], index: 0, kind: input, shape index: {}]
  %s1 = inlined_call_operand.hbm [shape: f32[2,8,32], index: 1, kind: input, shape index: {}]
  %s2 = inlined_call_operand.hbm [shape: f32[2,8,32], index: 2, kind: input, shape index: {}]
  %s3 = inlined_call_operand.vmem [shape: s32[2,1,8], index: 3, kind: input, shape index: {}]
  %s4 = inlined_call_operand.hbm [shape: f32[32,32], index: 4, kind: input, shape index: {}]
  %s5 = inlined_call_operand.hbm [shape: f32[2,8,32], index: 5, kind: output, shape index: {0}]
  %s6 = inlined_call_operand.hbm [shape: f32[2,8,8], index: 6, kind: output, shape index: {1}]
  %7 = xla_tuple %s5, %s6
  %s8 = sld [smem:[#allocation0]]
  $region54: #{tpu_custom_call.1} parent=0
    _
  %s10 = ssub.s32 1, %s8
  %s11 = scalar_select 0, %s10, %s8
  $region1: #{tpu_custom_call.1} parent=0
    #allocation2 [shape = 'u8[8192]{0}', space=vmem, size = 0x2000, scoped, tag = 'input window, operand 0, single buffered']
    #allocation3 [shape = 's32[1]{0}', space=sflag, size = 0x4, scoped, tag = 'scoped memory for tpu_custom_call.1']
    #allocation4 [shape = 's32[1]{0}', space=sflag, size = 0x4, scoped, tag = 'scoped memory for tpu_custom_call.1']
    #allocation5 [shape = 'u8[8192]{0}', space=vmem, size = 0x2000, scoped, tag = 'input window, operand 1, single buffered']
    #allocation6 [shape = 's32[1]{0}', space=sflag, size = 0x4, scoped, tag = 'scoped memory for tpu_custom_call.1']
    #allocation7 [shape = 'u8[8192]{0}', space=vmem, size = 0x2000, scoped, tag = 'input window, operand 2, single buffered']
    #allocation8 [shape = 'u8[16384]{0}', space=vmem, size = 0x4000, scoped, tag = 'input window, operand 4, single buffered']
    #allocation9 [shape = 's32[1]{0}', space=sflag, size = 0x4, scoped, tag = 'scoped memory for tpu_custom_call.1']
    #allocation10 [shape = 'u8[8192]{0}', space=vmem, size = 0x2000, scoped, tag = 'output window, operand 0, single buffered']
    #allocation11 [shape = 'u8[8192]{0}', space=vmem, size = 0x2000, scoped, tag = 'output window, operand 1, single buffered']
    #allocation12 [shape = 's32[1]{0}', space=sflag, size = 0x4, scoped, tag = 'scoped memory for tpu_custom_call.1']
    %12 = vsyncpa [#allocation3], 0
    %13 = vsyncpa [#allocation6], 0
    %14 = vsyncpa [#allocation9], 0
    %15 = vsyncpa [#allocation4], 0
    %16 = vsyncpa [#allocation12], 0
    // Predicated region
    $region2: #{tpu_custom_call.1} parent=1 // pred_check
      _
    $region3: #{tpu_custom_call.1} parent=1 // pred_check_branch
      %18 = sbr.rel (0) target = $region5
    $region4: #{tpu_custom_call.1} parent=1 // pred_region
      %s20 = ssub.s32 256, 256
      %21 = vsyncadd [#allocation3], %s20
      %s22 = sshll.u32 [#allocation2], 4
      %s23 = int_to_ptr.vmem [resolvable:$true] %s22
      %28 = dma.hbm_to_vmem [thread:$0]  %s0, 256, %s23, [#allocation3], 128, 128, 8
    $region5: #{tpu_custom_call.1} parent=1 // pred_fallthru
      _
    // Predicated region
    $region6: #{tpu_custom_call.1} parent=1 // pred_check
      _
    $region7: #{tpu_custom_call.1} parent=1 // pred_check_branch
      %30 = sbr.rel (0) target = $region9
    $region8: #{tpu_custom_call.1} parent=1 // pred_region
      %s32 = ssub.s32 256, 256
      %33 = vsyncadd [#allocation6], %s32
      %s34 = sshll.u32 [#allocation5], 4
      %s35 = int_to_ptr.vmem [resolvable:$true] %s34
      %40 = dma.hbm_to_vmem [thread:$0]  %s1, 256, %s35, [#allocation6], 128, 128, 8
    $region9: #{tpu_custom_call.1} parent=1 // pred_fallthru
      _
    // Predicated region
    $region10: #{tpu_custom_call.1} parent=1 // pred_check
      _
    $region11: #{tpu_custom_call.1} parent=1 // pred_check_branch
      %42 = sbr.rel (0) target = $region13
    $region12: #{tpu_custom_call.1} parent=1 // pred_region
      %s44 = ssub.s32 256, 256
      %45 = vsyncadd [#allocation6], %s44
      %s46 = sshll.u32 [#allocation7], 4
      %s47 = int_to_ptr.vmem [resolvable:$true] %s46
      %52 = dma.hbm_to_vmem [thread:$0]  %s2, 256, %s47, [#allocation6], 128, 128, 8
    $region13: #{tpu_custom_call.1} parent=1 // pred_fallthru
      _
    // Predicated region
    $region14: #{tpu_custom_call.1} parent=1 // pred_check
      _
    $region15: #{tpu_custom_call.1} parent=1 // pred_check_branch
      %54 = sbr.rel (0) target = $region17
    $region16: #{tpu_custom_call.1} parent=1 // pred_region
      _
    $region17: #{tpu_custom_call.1} parent=1 // pred_fallthru
      _
    // Predicated region
    $region18: #{tpu_custom_call.1} parent=1 // pred_check
      _
    $region19: #{tpu_custom_call.1} parent=1 // pred_check_branch
      %56 = sbr.rel (0) target = $region21
    $region20: #{tpu_custom_call.1} parent=1 // pred_region
      %s58 = ssub.s32 512, 512
      %59 = vsyncadd [#allocation9], %s58
      %s60 = sshll.u32 [#allocation8], 4
      %s61 = int_to_ptr.vmem [resolvable:$true] %s60
      %66 = dma.hbm_to_vmem [thread:$0]  %s4, 512, %s61, [#allocation9], 128, 128, 8
    $region21: #{tpu_custom_call.1} parent=1 // pred_fallthru
      _
    // Predicated region
    $region22: #{tpu_custom_call.1} parent=1 // pred_check
      _
    $region23: #{tpu_custom_call.1} parent=1 // pred_check_branch
      %68 = sbr.rel (0) target = $region25
    $region24: #{tpu_custom_call.1} parent=1 // pred_region
      %69 = dma.done [#allocation3], 256
    $region25: #{tpu_custom_call.1} parent=1 // pred_fallthru
      _
    // Predicated region
    $region26: #{tpu_custom_call.1} parent=1 // pred_check
      _
    $region27: #{tpu_custom_call.1} parent=1 // pred_check_branch
      %71 = sbr.rel (0) target = $region29
    $region28: #{tpu_custom_call.1} parent=1 // pred_region
      %72 = dma.done [#allocation6], 256
    $region29: #{tpu_custom_call.1} parent=1 // pred_fallthru
      _
    // Predicated region
    $region30: #{tpu_custom_call.1} parent=1 // pred_check
      _
    $region31: #{tpu_custom_call.1} parent=1 // pred_check_branch
      %74 = sbr.rel (0) target = $region33
    $region32: #{tpu_custom_call.1} parent=1 // pred_region
      %75 = dma.done [#allocation6], 256
    $region33: #{tpu_custom_call.1} parent=1 // pred_fallthru
      _
    // Predicated region
    $region34: #{tpu_custom_call.1} parent=1 // pred_check
      _
    $region35: #{tpu_custom_call.1} parent=1 // pred_check_branch
      %77 = sbr.rel (0) target = $region37
    $region36: #{tpu_custom_call.1} parent=1 // pred_region
      %78 = dma.done [#allocation9], 512
    $region37: #{tpu_custom_call.1} parent=1 // pred_fallthru
      _
    %v79 = vld [vmem:[#allocation2] sm:$0xff]
    %v80 = vld [vmem:[#allocation2 + $0x8] sm:$0xff]
    %v81 = vld [vmem:[#allocation8] sm:$0xff]
    %v82 = vld [vmem:[#allocation8 + $0x8] sm:$0xff]
    %v83 = vld [vmem:[#allocation8 + $0x10] sm:$0xff]
    %v84 = vld [vmem:[#allocation8 + $0x18] sm:$0xff]
    %vm85 = vcmask 261120
    %v87 = vsel %vm85, %v79, 0
    %v90 = vsel %vm85, %v80, 0
    %92 = vmatprep.subr.mxu0 0.0
    %93 = vmatpush1.msra.mxu0 0.0
    %94 = vmatprep.subr.mxu0 0.0
    %95 = vmatpush1.msra.mxu0 0.0
    %96 = vmatprep.subr.mxu0 0.0
    %97 = vmatpush1.msra.mxu0 0.0
    %98 = vmatprep.subr.mxu0 0.0
    %99 = vmatpush1.msra.mxu0 0.0
    %100 = vmatprep.subr.mxu0 0.0
    %101 = vmatpush1.msra.mxu0 0.0
    %102 = vmatprep.subr.mxu0 0.0
    %103 = vmatpush1.msra.mxu0 0.0
    %104 = vmatprep.subr.mxu0 0.0
    %105 = vmatpush1.msra.mxu0 0.0
    %106 = vmatprep.subr.mxu0 0.0
    %107 = vmatpush1.msra.mxu0 0.0
    %108 = vmatprep.subr.mxu0 0.0
    %109 = vmatpush1.msra.mxu0 0.0
    %110 = vmatprep.subr.mxu0 0.0
    %111 = vmatpush1.msra.mxu0 0.0
    %112 = vmatprep.subr.mxu0 0.0
    %113 = vmatpush1.msra.mxu0 0.0
    %114 = vmatprep.subr.mxu0 0.0
    %115 = vmatpush1.msra.mxu0 0.0
    %116 = vmatprep.subr.mxu0 0.0
    %117 = vmatpush1.msra.mxu0 %v84
    %118 = vmatprep.subr.mxu0 0.0
    %119 = vmatpush1.msra.mxu0 %v83
    %120 = vmatprep.subr.mxu0 0.0
    %121 = vmatpush1.msra.mxu0 %v82
    %122 = vmatprep.subr.mxu0 0.0
    %123 = vmatpush1.msra.mxu0 %v81
    %124 = vmatprep.subr.mxu0 0.0
    %125 = vmatpush2.msra.mxu0 0.0
    %126 = vmatprep.subr.mxu0 0.0
    %127 = vmatpush2.msra.mxu0 0.0
    %128 = vmatprep.subr.mxu0 0.0
    %129 = vmatpush2.msra.mxu0 0.0
    %130 = vmatprep.subr.mxu0 0.0
    %131 = vmatpush2.msra.mxu0 0.0
    %132 = vmatprep.subr.mxu0 0.0
    %133 = vmatpush2.msra.mxu0 0.0
    %134 = vmatprep.subr.mxu0 0.0
    %135 = vmatpush2.msra.mxu0 0.0
    %136 = vmatprep.subr.mxu0 0.0
    %137 = vmatpush2.msra.mxu0 0.0
    %138 = vmatprep.subr.mxu0 0.0
    %139 = vmatpush2.msra.mxu0 0.0
    %140 = vmatprep.subr.mxu0 0.0
    %141 = vmatpush2.msra.mxu0 0.0
    %142 = vmatprep.subr.mxu0 0.0
    %143 = vmatpush2.msra.mxu0 0.0
    %144 = vmatprep.subr.mxu0 0.0
    %145 = vmatpush2.msra.mxu0 0.0
    %146 = vmatprep.subr.mxu0 0.0
    %147 = vmatpush2.msra.mxu0 0.0
    %148 = vmatprep.subr.mxu0 0.0
    %149 = vmatpush2.msra.mxu0 0.0
    %150 = vmatprep.subr.mxu0 0.0
    %151 = vmatpush2.msra.mxu0 0.0
    %152 = vmatprep.subr.mxu0 0.0
    %153 = vmatpush2.msra.mxu0 0.0
    %154 = vmatprep.subr.mxu0 0.0
    %155 = vmatpush2.msra.mxu0 0.0
    %156 = vmatprep.mubr.f32.mxu0 0.0
    %157 = vmatmul.mubr.f32.gmra.mxu0 %v87
    %v158 = vpop.f32.mrf.mxu0
    %v159 = vadd.f32 0.0, %v158
    %v160 = vpop.f32.mrf.mxu0
    %161 = vmatprep.mubr.f32.mxu0 0.0
    %162 = vmatmul.mubr.f32.gmra.mxu0 %v90
    %v163 = vpop.f32.mrf.mxu0
    %v164 = vadd.f32 0.0, %v163
    %v165 = vpop.f32.mrf.mxu0
    %166 = vdwg.mxu0
    %v167 = vmul.f32 %v159, 0.17677669
    %v168 = vmul.f32 %v164, 0.17677669
    %v169 = vld [vmem:[#allocation5] sm:$0xff]
    %v170 = vld [vmem:[#allocation5 + $0x8] sm:$0xff]
    %v172 = vsel %vm85, %v167, 0
    %v175 = vsel %vm85, %v169, 0
    %177 = vmatprep.subr.mxu0 0.0
    %178 = vmatpush1.xpose.msra.mxu0 0.0
    %179 = vmatprep.subr.mxu0 0.0
    %180 = vmatpush1.xpose.msra.mxu0 0.0
    %181 = vmatprep.subr.mxu0 0.0
    %182 = vmatpush1.xpose.msra.mxu0 0.0
    %183 = vmatprep.subr.mxu0 0.0
    %184 = vmatpush1.xpose.msra.mxu0 0.0
    %185 = vmatprep.subr.mxu0 0.0
    %186 = vmatpush1.xpose.msra.mxu0 0.0
    %187 = vmatprep.subr.mxu0 0.0
    %188 = vmatpush1.xpose.msra.mxu0 0.0
    %189 = vmatprep.subr.mxu0 0.0
    %190 = vmatpush1.xpose.msra.mxu0 0.0
    %191 = vmatprep.subr.mxu0 0.0
    %192 = vmatpush1.xpose.msra.mxu0 0.0
    %193 = vmatprep.subr.mxu0 0.0
    %194 = vmatpush1.xpose.msra.mxu0 0.0
    %195 = vmatprep.subr.mxu0 0.0
    %196 = vmatpush1.xpose.msra.mxu0 0.0
    %197 = vmatprep.subr.mxu0 0.0
    %198 = vmatpush1.xpose.msra.mxu0 0.0
    %199 = vmatprep.subr.mxu0 0.0
    %200 = vmatpush1.xpose.msra.mxu0 0.0
    %201 = vmatprep.subr.mxu0 0.0
    %202 = vmatpush1.xpose.msra.mxu0 0.0
    %203 = vmatprep.subr.mxu0 0.0
    %204 = vmatpush1.xpose.msra.mxu0 0.0
    %205 = vmatprep.subr.mxu0 0.0
    %206 = vmatpush1.xpose.msra.mxu0 0.0
    %207 = vmatprep.subr.mxu0 0.0
    %208 = vmatpush1.xpose.msra.mxu0 %v175
    %209 = vmatprep.subr.mxu0 0.0
    %210 = vmatpush2.xpose.msra.mxu0 0.0
    %211 = vmatprep.subr.mxu0 0.0
    %212 = vmatpush2.xpose.msra.mxu0 0.0
    %213 = vmatprep.subr.mxu0 0.0
    %214 = vmatpush2.xpose.msra.mxu0 0.0
    %215 = vmatprep.subr.mxu0 0.0
    %216 = vmatpush2.xpose.msra.mxu0 0.0
    %217 = vmatprep.subr.mxu0 0.0
    %218 = vmatpush2.xpose.msra.mxu0 0.0
    %219 = vmatprep.subr.mxu0 0.0
    %220 = vmatpush2.xpose.msra.mxu0 0.0
    %221 = vmatprep.subr.mxu0 0.0
    %222 = vmatpush2.xpose.msra.mxu0 0.0
    %223 = vmatprep.subr.mxu0 0.0
    %224 = vmatpush2.xpose.msra.mxu0 0.0
    %225 = vmatprep.subr.mxu0 0.0
    %226 = vmatpush2.xpose.msra.mxu0 0.0
    %227 = vmatprep.subr.mxu0 0.0
    %228 = vmatpush2.xpose.msra.mxu0 0.0
    %229 = vmatprep.subr.mxu0 0.0
    %230 = vmatpush2.xpose.msra.mxu0 0.0
    %231 = vmatprep.subr.mxu0 0.0
    %232 = vmatpush2.xpose.msra.mxu0 0.0
    %233 = vmatprep.subr.mxu0 0.0
    %234 = vmatpush2.xpose.msra.mxu0 0.0
    %235 = vmatprep.subr.mxu0 0.0
    %236 = vmatpush2.xpose.msra.mxu0 0.0
    %237 = vmatprep.subr.mxu0 0.0
    %238 = vmatpush2.xpose.msra.mxu0 0.0
    %239 = vmatprep.subr.mxu0 0.0
    %240 = vmatpush2.xpose.msra.mxu0 0.0
    %241 = vmatprep.mubr.f32.mxu0 0.0
    %242 = vmatmul.mubr.f32.gmra.mxu0 %v172
    %v243 = vpop.f32.mrf.mxu0
    %v244 = vadd.f32 0.0, %v243
    %v245 = vpop.f32.mrf.mxu0
    %246 = vdwg.mxu0
    %v248 = vsel %vm85, %v168, 0
    %v251 = vsel %vm85, %v170, 0
    %253 = vmatprep.subr.mxu0 0.0
    %254 = vmatpush1.xpose.msra.mxu0 0.0
    %255 = vmatprep.subr.mxu0 0.0
    %256 = vmatpush1.xpose.msra.mxu0 0.0
    %257 = vmatprep.subr.mxu0 0.0
    %258 = vmatpush1.xpose.msra.mxu0 0.0
    %259 = vmatprep.subr.mxu0 0.0
    %260 = vmatpush1.xpose.msra.mxu0 0.0
    %261 = vmatprep.subr.mxu0 0.0
    %262 = vmatpush1.xpose.msra.mxu0 0.0
    %263 = vmatprep.subr.mxu0 0.0
    %264 = vmatpush1.xpose.msra.mxu0 0.0
    %265 = vmatprep.subr.mxu0 0.0
    %266 = vmatpush1.xpose.msra.mxu0 0.0
    %267 = vmatprep.subr.mxu0 0.0
    %268 = vmatpush1.xpose.msra.mxu0 0.0
    %269 = vmatprep.subr.mxu0 0.0
    %270 = vmatpush1.xpose.msra.mxu0 0.0
    %271 = vmatprep.subr.mxu0 0.0
    %272 = vmatpush1.xpose.msra.mxu0 0.0
    %273 = vmatprep.subr.mxu0 0.0
    %274 = vmatpush1.xpose.msra.mxu0 0.0
    %275 = vmatprep.subr.mxu0 0.0
    %276 = vmatpush1.xpose.msra.mxu0 0.0
    %277 = vmatprep.subr.mxu0 0.0
    %278 = vmatpush1.xpose.msra.mxu0 0.0
    %279 = vmatprep.subr.mxu0 0.0
    %280 = vmatpush1.xpose.msra.mxu0 0.0
    %281 = vmatprep.subr.mxu0 0.0
    %282 = vmatpush1.xpose.msra.mxu0 0.0
    %283 = vmatprep.subr.mxu0 0.0
    %284 = vmatpush1.xpose.msra.mxu0 %v251
    %285 = vmatprep.subr.mxu0 0.0
    %286 = vmatpush2.xpose.msra.mxu0 0.0
    %287 = vmatprep.subr.mxu0 0.0
    %288 = vmatpush2.xpose.msra.mxu0 0.0
    %289 = vmatprep.subr.mxu0 0.0
    %290 = vmatpush2.xpose.msra.mxu0 0.0
    %291 = vmatprep.subr.mxu0 0.0
    %292 = vmatpush2.xpose.msra.mxu0 0.0
    %293 = vmatprep.subr.mxu0 0.0
    %294 = vmatpush2.xpose.msra.mxu0 0.0
    %295 = vmatprep.subr.mxu0 0.0
    %296 = vmatpush2.xpose.msra.mxu0 0.0
    %297 = vmatprep.subr.mxu0 0.0
    %298 = vmatpush2.xpose.msra.mxu0 0.0
    %299 = vmatprep.subr.mxu0 0.0
    %300 = vmatpush2.xpose.msra.mxu0 0.0
    %301 = vmatprep.subr.mxu0 0.0
    %302 = vmatpush2.xpose.msra.mxu0 0.0
    %303 = vmatprep.subr.mxu0 0.0
    %304 = vmatpush2.xpose.msra.mxu0 0.0
    %305 = vmatprep.subr.mxu0 0.0
    %306 = vmatpush2.xpose.msra.mxu0 0.0
    %307 = vmatprep.subr.mxu0 0.0
    %308 = vmatpush2.xpose.msra.mxu0 0.0
    %309 = vmatprep.subr.mxu0 0.0
    %310 = vmatpush2.xpose.msra.mxu0 0.0
    %311 = vmatprep.subr.mxu0 0.0
    %312 = vmatpush2.xpose.msra.mxu0 0.0
    %313 = vmatprep.subr.mxu0 0.0
    %314 = vmatpush2.xpose.msra.mxu0 0.0
    %315 = vmatprep.subr.mxu0 0.0
    %316 = vmatpush2.xpose.msra.mxu0 0.0
    %317 = vmatprep.mubr.f32.mxu0 0.0
    %318 = vmatmul.mubr.f32.gmra.mxu0 %v248
    %v319 = vpop.f32.mrf.mxu0
    %v320 = vadd.f32 0.0, %v319
    %v321 = vpop.f32.mrf.mxu0
    %322 = vdwg.mxu0
    %v323 = vld [vmem:[%s3] sm:$0x1]
    %v324 = vld [vmem:[%s3 + $0x1] sm:$0x1]
    %vm325 = vcmp.eq.s32.totalorder %v323, 0
    %vm326 = vcmp.eq.s32.totalorder %v324, 0
    %v327 = vsel %vm325, 1, 0
    %v328 = vsel %vm326, 1, 0
    %v329 = vlaneseq
    %v330 = vshrl.u32 %v329, 7
    %v331 = vsub.s32 0, %v330
    %v332 = vrot.slane %v327, %v331
    %v333 = vlaneseq
    %v334 = vshrl.u32 %v333, 7
    %v335 = vsub.s32 0, %v334
    %v336 = vrot.slane %v328, %v335
    %vm337 = vcmp.eq.s32.totalorder %v332, 1
    %vm338 = vcmp.eq.s32.totalorder %v336, 1
    %v339 = vsel %vm337, -1e+09, %v244
    %v340 = vsel %vm338, -1e+09, %v320
    %vm341 = vcmask 64512
    %v342 = vsel %vm341, %v339, -inf
    %343 = vmax.xlane.f32.xlu0 %v342
    %v344 = vpop.xlane.xlu0 %343
    %v345 = vsel %vm341, %v340, -inf
    %346 = vmax.xlane.f32.xlu0 %v345
    %v347 = vpop.xlane.xlu0 %346
    %v348 = vsub.f32 %v339, %v344
    %v349 = vsub.f32 %v340, %v347
    %v350 = vmul.f32 %v348, 1.442695
    %v351 = vpow.pop %v350
    %v352 = vmul.f32 %v349, 1.442695
    %v353 = vpow.pop %v352
    %v354 = vsel %vm341, %v351, 0.0
    %355 = vadd.xlane.f32.xlu0 %v354
    %v356 = vpop.xlane.xlu0 %355
    %v357 = vsel %vm341, %v353, 0.0
    %358 = vadd.xlane.f32.xlu0 %v357
    %v359 = vpop.xlane.xlu0 %358
    %v360 = vrcp.pop %v356
    %v361 = vrcp.pop %v359
    %v362 = vmul.f32 %v351, %v360
    %v363 = vmul.f32 %v353, %v361
    %v364 = vld [vmem:[#allocation7] sm:$0xff]
    %v365 = vld [vmem:[#allocation7 + $0x8] sm:$0xff]
    %v367 = vsel %vm341, %v362, 0
    %369 = vmatprep.subr.mxu0 0.0
    %370 = vmatpush1.msra.mxu0 0.0
    %371 = vmatprep.subr.mxu0 0.0
    %372 = vmatpush1.msra.mxu0 0.0
    %373 = vmatprep.subr.mxu0 0.0
    %374 = vmatpush1.msra.mxu0 0.0
    %375 = vmatprep.subr.mxu0 0.0
    %376 = vmatpush1.msra.mxu0 0.0
    %377 = vmatprep.subr.mxu0 0.0
    %378 = vmatpush1.msra.mxu0 0.0
    %379 = vmatprep.subr.mxu0 0.0
    %380 = vmatpush1.msra.mxu0 0.0
    %381 = vmatprep.subr.mxu0 0.0
    %382 = vmatpush1.msra.mxu0 0.0
    %383 = vmatprep.subr.mxu0 0.0
    %384 = vmatpush1.msra.mxu0 0.0
    %385 = vmatprep.subr.mxu0 0.0
    %386 = vmatpush1.msra.mxu0 0.0
    %387 = vmatprep.subr.mxu0 0.0
    %388 = vmatpush1.msra.mxu0 0.0
    %389 = vmatprep.subr.mxu0 0.0
    %390 = vmatpush1.msra.mxu0 0.0
    %391 = vmatprep.subr.mxu0 0.0
    %392 = vmatpush1.msra.mxu0 0.0
    %393 = vmatprep.subr.mxu0 0.0
    %394 = vmatpush1.msra.mxu0 0.0
    %395 = vmatprep.subr.mxu0 0.0
    %396 = vmatpush1.msra.mxu0 0.0
    %397 = vmatprep.subr.mxu0 0.0
    %398 = vmatpush1.msra.mxu0 0.0
    %399 = vmatprep.subr.mxu0 0.0
    %400 = vmatpush1.msra.mxu0 %v364
    %401 = vmatprep.subr.mxu0 0.0
    %402 = vmatpush2.msra.mxu0 0.0
    %403 = vmatprep.subr.mxu0 0.0
    %404 = vmatpush2.msra.mxu0 0.0
    %405 = vmatprep.subr.mxu0 0.0
    %406 = vmatpush2.msra.mxu0 0.0
    %407 = vmatprep.subr.mxu0 0.0
    %408 = vmatpush2.msra.mxu0 0.0
    %409 = vmatprep.subr.mxu0 0.0
    %410 = vmatpush2.msra.mxu0 0.0
    %411 = vmatprep.subr.mxu0 0.0
    %412 = vmatpush2.msra.mxu0 0.0
    %413 = vmatprep.subr.mxu0 0.0
    %414 = vmatpush2.msra.mxu0 0.0
    %415 = vmatprep.subr.mxu0 0.0
    %416 = vmatpush2.msra.mxu0 0.0
    %417 = vmatprep.subr.mxu0 0.0
    %418 = vmatpush2.msra.mxu0 0.0
    %419 = vmatprep.subr.mxu0 0.0
    %420 = vmatpush2.msra.mxu0 0.0
    %421 = vmatprep.subr.mxu0 0.0
    %422 = vmatpush2.msra.mxu0 0.0
    %423 = vmatprep.subr.mxu0 0.0
    %424 = vmatpush2.msra.mxu0 0.0
    %425 = vmatprep.subr.mxu0 0.0
    %426 = vmatpush2.msra.mxu0 0.0
    %427 = vmatprep.subr.mxu0 0.0
    %428 = vmatpush2.msra.mxu0 0.0
    %429 = vmatprep.subr.mxu0 0.0
    %430 = vmatpush2.msra.mxu0 0.0
    %431 = vmatprep.subr.mxu0 0.0
    %432 = vmatpush2.msra.mxu0 0.0
    %433 = vmatprep.mubr.f32.mxu0 0.0
    %434 = vmatmul.mubr.f32.gmra.mxu0 %v367
    %v435 = vpop.f32.mrf.mxu0
    %v436 = vadd.f32 0.0, %v435
    %v437 = vpop.f32.mrf.mxu0
    %438 = vdwg.mxu0
    %v440 = vsel %vm341, %v363, 0
    %442 = vmatprep.subr.mxu0 0.0
    %443 = vmatpush1.msra.mxu0 0.0
    %444 = vmatprep.subr.mxu0 0.0
    %445 = vmatpush1.msra.mxu0 0.0
    %446 = vmatprep.subr.mxu0 0.0
    %447 = vmatpush1.msra.mxu0 0.0
    %448 = vmatprep.subr.mxu0 0.0
    %449 = vmatpush1.msra.mxu0 0.0
    %450 = vmatprep.subr.mxu0 0.0
    %451 = vmatpush1.msra.mxu0 0.0
    %452 = vmatprep.subr.mxu0 0.0
    %453 = vmatpush1.msra.mxu0 0.0
    %454 = vmatprep.subr.mxu0 0.0
    %455 = vmatpush1.msra.mxu0 0.0
    %456 = vmatprep.subr.mxu0 0.0
    %457 = vmatpush1.msra.mxu0 0.0
    %458 = vmatprep.subr.mxu0 0.0
    %459 = vmatpush1.msra.mxu0 0.0
    %460 = vmatprep.subr.mxu0 0.0
    %461 = vmatpush1.msra.mxu0 0.0
    %462 = vmatprep.subr.mxu0 0.0
    %463 = vmatpush1.msra.mxu0 0.0
    %464 = vmatprep.subr.mxu0 0.0
    %465 = vmatpush1.msra.mxu0 0.0
    %466 = vmatprep.subr.mxu0 0.0
    %467 = vmatpush1.msra.mxu0 0.0
    %468 = vmatprep.subr.mxu0 0.0
    %469 = vmatpush1.msra.mxu0 0.0
    %470 = vmatprep.subr.mxu0 0.0
    %471 = vmatpush1.msra.mxu0 0.0
    %472 = vmatprep.subr.mxu0 0.0
    %473 = vmatpush1.msra.mxu0 %v365
    %474 = vmatprep.subr.mxu0 0.0
    %475 = vmatpush2.msra.mxu0 0.0
    %476 = vmatprep.subr.mxu0 0.0
    %477 = vmatpush2.msra.mxu0 0.0
    %478 = vmatprep.subr.mxu0 0.0
    %479 = vmatpush2.msra.mxu0 0.0
    %480 = vmatprep.subr.mxu0 0.0
    %481 = vmatpush2.msra.mxu0 0.0
    %482 = vmatprep.subr.mxu0 0.0
    %483 = vmatpush2.msra.mxu0 0.0
    %484 = vmatprep.subr.mxu0 0.0
    %485 = vmatpush2.msra.mxu0 0.0
    %486 = vmatprep.subr.mxu0 0.0
    %487 = vmatpush2.msra.mxu0 0.0
    %488 = vmatprep.subr.mxu0 0.0
    %489 = vmatpush2.msra.mxu0 0.0
    %490 = vmatprep.subr.mxu0 0.0
    %491 = vmatpush2.msra.mxu0 0.0
    %492 = vmatprep.subr.mxu0 0.0
    %493 = vmatpush2.msra.mxu0 0.0
    %494 = vmatprep.subr.mxu0 0.0
    %495 = vmatpush2.msra.mxu0 0.0
    %496 = vmatprep.subr.mxu0 0.0
    %497 = vmatpush2.msra.mxu0 0.0
    %498 = vmatprep.subr.mxu0 0.0
    %499 = vmatpush2.msra.mxu0 0.0
    %500 = vmatprep.subr.mxu0 0.0
    %501 = vmatpush2.msra.mxu0 0.0
    %502 = vmatprep.subr.mxu0 0.0
    %503 = vmatpush2.msra.mxu0 0.0
    %504 = vmatprep.subr.mxu0 0.0
    %505 = vmatpush2.msra.mxu0 0.0
    %506 = vmatprep.mubr.f32.mxu0 0.0
    %507 = vmatmul.mubr.f32.gmra.mxu0 %v440
    %v508 = vpop.f32.mrf.mxu0
    %v509 = vadd.f32 0.0, %v508
    %v510 = vpop.f32.mrf.mxu0
    %511 = vdwg.mxu0
    %512 = vst.msk [vmem:[#allocation10] sm:$0xff] %vm85, %v436
    %513 = vst.msk [vmem:[#allocation10 + $0x8] sm:$0xff] %vm85, %v509
    %514 = vst.msk [vmem:[#allocation11] sm:$0xff] %vm341, %v362
    %515 = vst.msk [vmem:[#allocation11 + $0x8] sm:$0xff] %vm341, %v363
    // Predicated region
    $region38: #{tpu_custom_call.1} parent=1 // pred_check
      _
    $region39: #{tpu_custom_call.1} parent=1 // pred_check_branch
      %517 = sbr.rel (0) target = $region41
    $region40: #{tpu_custom_call.1} parent=1 // pred_region
      %s519 = ssub.s32 256, 256
      %520 = vsyncadd [#allocation4], %s519
      %s521 = sshll.u32 [#allocation10], 4
      %s522 = int_to_ptr.vmem [resolvable:$true] %s521
      %527 = dma.vmem_to_hbm [thread:$0]  %s522, 256, %s5, [#allocation4], 128, 128, 8
    $region41: #{tpu_custom_call.1} parent=1 // pred_fallthru
      _
    // Predicated region
    $region42: #{tpu_custom_call.1} parent=1 // pred_check
      _
    $region43: #{tpu_custom_call.1} parent=1 // pred_check_branch
      %529 = sbr.rel (0) target = $region45
    $region44: #{tpu_custom_call.1} parent=1 // pred_region
      %s531 = ssub.s32 256, 256
      %532 = vsyncadd [#allocation12], %s531
      %s533 = sshll.u32 [#allocation11], 4
      %s534 = int_to_ptr.vmem [resolvable:$true] %s533
      %539 = dma.vmem_to_hbm [thread:$0]  %s534, 256, %s6, [#allocation12], 128, 128, 8
    $region45: #{tpu_custom_call.1} parent=1 // pred_fallthru
      _
    // Predicated region
    $region46: #{tpu_custom_call.1} parent=1 // pred_check
      _
    $region47: #{tpu_custom_call.1} parent=1 // pred_check_branch
      %541 = sbr.rel (0) target = $region49
    $region48: #{tpu_custom_call.1} parent=1 // pred_region
      %542 = dma.done [#allocation4], 256
    $region49: #{tpu_custom_call.1} parent=1 // pred_fallthru
      _
    // Predicated region
    $region50: #{tpu_custom_call.1} parent=1 // pred_check
      _
    $region51: #{tpu_custom_call.1} parent=1 // pred_check_branch
      %544 = sbr.rel (0) target = $region53
    $region52: #{tpu_custom_call.1} parent=1 // pred_region
      %545 = dma.done [#allocation12], 256
    $region53: #{tpu_custom_call.1} parent=1 // pred_fallthru
      _
    %546 = vsyncpa [#allocation3], 1
    %547 = vsyncpa [#allocation6], 1
    %548 = vsyncpa [#allocation9], 1
    %549 = vsyncpa [#allocation4], 1
    %550 = vsyncpa [#allocation12], 1

</llo_original>
